<compile_context>
chip_gen: v6e
topology: v6e:2x2x1
jax: 0.10.0
libtpu: 0.0.40
codegen_flags: <defaults>
</compile_context>

<pallas_src>
import jax
import jax.numpy as jnp
from jax.experimental import pallas as pl
from jax.experimental.pallas import tpu as pltpu

LATENT_SIZE = 29
DIMS = [32, 32]
LAST_DIM = 1
IN_DIM = LATENT_SIZE + 3                       # 32
LAYER_DIMS = [IN_DIM] + DIMS + [LAST_DIM]      # [32, 32, 32, 1]

PACK = 4                                       # samples per 128-lane row (4 * 32 = 128)
ALIGN = 128                                    # batch rounded to 128 samples (32 packed rows)
TILE_N = 32768                                 # samples per grid step (sweep ~16K-128K)
WIDE = PACK * IN_DIM                           # 128
OUT_W = PACK * LAST_DIM                        # 4


def _round_up(n, m):
    return ((n + m - 1) // m) * m


def decoder_kernel(x_ref, w0_ref, b0_ref, w1_ref, b1_ref, w2_ref, b2_ref, o_ref):
    # x_ref: (T4, 128) f32 with 4 samples packed per lane-dense row (cast to bf16 in-register).
    # w0/w1: (128, 128) bf16 block-diagonal; w2: (128, 4) bf16 block-diagonal.
    # b0/b1: (1, 128) f32 tiled; b2: (1, 4) f32 tiled.  All weights stay VMEM-resident.
    x = x_ref[...].astype(jnp.bfloat16)        # f32 HBM read, bf16 into the MXU

    # lin0 + ReLU  (bf16 MXU operands, f32 accumulation + f32 elementwise: v5e-friendly)
    h = jnp.dot(x, w0_ref[...], preferred_element_type=jnp.float32) + b0_ref[...]
    h = jnp.maximum(h, 0.0)

    # lin1 + ReLU
    h = jnp.dot(h.astype(jnp.bfloat16), w1_ref[...],
                preferred_element_type=jnp.float32) + b1_ref[...]
    h = jnp.maximum(h, 0.0)

    # lin2 + final tanh (self.th in the PyTorch module)
    h = jnp.dot(h.astype(jnp.bfloat16), w2_ref[...],
                preferred_element_type=jnp.float32) + b2_ref[...]
    o_ref[...] = jnp.tanh(h).astype(o_ref.dtype)


def pack_params(params):
    """One-time packing (hoisted out of the per-call path).

    Block-diagonal kron(I4, W) weights are numerically identical to the plain MLP (zero blocks
    contribute exactly 0) but make every load / MXU feed fully lane-dense for 4 packed samples.
    """
    (w0, b0), (w1, b1), (w2, b2) = params
    eye = jnp.eye(PACK, dtype=jnp.float32)
    w0p = jnp.kron(eye, w0).astype(jnp.bfloat16)            # (128, 128)
    w1p = jnp.kron(eye, w1).astype(jnp.bfloat16)            # (128, 128)
    w2p = jnp.kron(eye, w2).astype(jnp.bfloat16)            # (128, 4)
    b0p = jnp.tile(b0.astype(jnp.float32), (1, PACK))       # (1, 128)
    b1p = jnp.tile(b1.astype(jnp.float32), (1, PACK))       # (1, 128)
    b2p = jnp.tile(b2.astype(jnp.float32), (1, PACK))       # (1, 4)
    return (w0p, b0p, w1p, b1p, w2p, b2p)


def decoder_forward(x, packed_params, tile_n=TILE_N):
    """x: (N, 32) = [latent(29) | xyz(3)] float32.  Returns (N, 1) float32."""
    w0p, b0p, w1p, b1p, w2p, b2p = packed_params
    N, F = x.shape
    assert F == IN_DIM

    # --- Tiling: round the *tile* (not the batch) so padding stays minimal. -----------------
    # n_pad is a multiple of 128 samples; num_steps ~= n_pad / tile_n; the effective tile is
    # then rounded up to 128 so every grid step is a full, aligned block (no partial tiles).
    n_min = _round_up(max(N, ALIGN), ALIGN)
    num_steps = max(1, pl.cdiv(n_min, tile_n))
    tile_eff = _round_up(pl.cdiv(n_min, num_steps), ALIGN)
    n_pad = tile_eff * num_steps

    xq = x
    if n_pad != N:                              # only the ragged tail forces a pad/copy
        xq = jnp.pad(xq, ((0, n_pad - N), (0, 0)))
    xq = xq.reshape(n_pad // PACK, WIDE)        # (N/4, 128) f32: free row-major bitcast

    t_rows = tile_eff // PACK                   # packed rows per grid step

    def full(shape):
        # Tiny resident weight/bias blocks (same block index every step -> stays in VMEM).
        return pl.BlockSpec(shape, lambda i: (0, 0))

    # Cost estimate reflects the *actual* MXU work (block-diagonal 4x padding) and f32 x reads.
    weight_bytes = 2 * (2 * WIDE * WIDE + WIDE * OUT_W) + 4 * (2 * WIDE + OUT_W)
    cost = pl.CostEstimate(
        flops=2 * (n_pad // PACK) * (2 * WIDE * WIDE + WIDE * OUT_W),
        transcendentals=n_pad * LAST_DIM,
        bytes_accessed=n_pad * IN_DIM * 4 + n_pad * LAST_DIM * 4 + weight_bytes,
    )

    # VMEM: 2x f32 x-buffers + 2x (lane-padded) out-buffers + resident weights.
    # Default tile (32K samples) ~= 17 MiB total -> fits the 32 MiB scoped default everywhere
    # (v7x included).  Larger tiles need a proportionally larger limit.
    vmem_needed = 4 * (t_rows * WIDE * 4) + (2 << 20)
    vmem_limit = max(32 << 20, vmem_needed)

    out_packed = pl.pallas_call(
        decoder_kernel,
        out_shape=jax.ShapeDtypeStruct((n_pad // PACK, OUT_W), jnp.float32),
        grid_spec=pltpu.PrefetchScalarGridSpec(
            num_scalar_prefetch=0,
            grid=(num_steps,),
            in_specs=[
                pl.BlockSpec((t_rows, WIDE), lambda i: (i, 0)),
                full((WIDE, WIDE)), full((1, WIDE)),
                full((WIDE, WIDE)), full((1, WIDE)),
                full((WIDE, OUT_W)), full((1, OUT_W)),
            ],
            out_specs=pl.BlockSpec((t_rows, OUT_W), lambda i: (i, 0)),
        ),
        compiler_params=pltpu.CompilerParams(
            dimension_semantics=("parallel",),
            vmem_limit_bytes=int(vmem_limit),
        ),
        cost_estimate=cost,
    )(xq, w0p, b0p, w1p, b1p, w2p, b2p)

    # (N/4, 4) row-major == (N, 1) in HBM: unpack (free) and drop padding rows.
    return out_packed.reshape(n_pad, LAST_DIM)[:N]


def init_params(key):
    """Deterministic init matching nn.Linear default: U(-1/sqrt(fan_in), +1/sqrt(fan_in))."""
    params = []
    for l in range(len(LAYER_DIMS) - 1):
        fan_in, fan_out = LAYER_DIMS[l], LAYER_DIMS[l + 1]
        key, kw, kb = jax.random.split(key, 3)
        bound = 1.0 / jnp.sqrt(fan_in)
        w = jax.random.uniform(kw, (fan_in, fan_out), jnp.float32, -bound, bound)
        b = jax.random.uniform(kb, (1, fan_out), jnp.float32, -bound, bound)
        params.append((w, b))
    return params


def decoder_reference(x, params):
    """Pure-JAX reference mirroring the kernel numerics (bf16 MXU inputs, f32 accumulation)."""
    (w0, b0), (w1, b1), (w2, b2) = params
    q = lambda a: a.astype(jnp.bfloat16).astype(jnp.float32)
    hp = jax.lax.Precision.HIGHEST
    h = jnp.maximum(jnp.dot(q(x), q(w0), precision=hp) + b0, 0.0)
    h = jnp.maximum(jnp.dot(q(h), q(w1), precision=hp) + b1, 0.0)
    return jnp.tanh(jnp.dot(q(h), q(w2), precision=hp) + b2)


if __name__ == "__main__":
    key = jax.random.PRNGKey(0)
    key, kx = jax.random.split(key)

    N = 1000  # query points (rows of [latent | xyz]); deliberately not tile/128-aligned
    x = jax.random.normal(kx, (N, IN_DIM), dtype=jnp.float32)
    params = init_params(key)
    packed = pack_params(params)              # hoisted one-time weight packing

    out = jax.block_until_ready(decoder_forward(x, packed))
    ref = decoder_reference(x, params)

    assert out.shape == (N, LAST_DIM)
    assert jnp.allclose(out, ref, atol=2e-3, rtol=2e-3), float(jnp.max(jnp.abs(out - ref)))

    # TODO(synk): dropout / latent_dropout / LayerNorm / weight_norm / latent_in / xyz_in_all
    # branches are inactive under the default constructor flags and are not emitted here.
    print("KERNEL_OK")
</pallas_src>

<mosaic_0001>
module attributes {stable_mosaic.version = 11 : i64} {
  func.func @decoder_kernel(%arg0: i32, %arg1: memref<256x128xf32, #tpu.memory_space<vmem>>, %arg2: memref<128x128xbf16, #tpu.memory_space<vmem>>, %arg3: memref<1x128xf32, #tpu.memory_space<vmem>>, %arg4: memref<128x128xbf16, #tpu.memory_space<vmem>>, %arg5: memref<1x128xf32, #tpu.memory_space<vmem>>, %arg6: memref<128x4xbf16, #tpu.memory_space<vmem>>, %arg7: memref<1x4xf32, #tpu.memory_space<vmem>>, %arg8: memref<256x4xf32, #tpu.memory_space<vmem>>) attributes {dimension_semantics = [#tpu.dimension_semantics<parallel>], iteration_bounds = array<i64: 1>, scalar_prefetch = 0 : i64, scratch_operands = 0 : i64, tpu.core_type = #tpu.core_type<tc>, window_params = [{transform_indices = @transform_0, window_bounds = array<i64: 256, 128>}, {pipeline_mode = #tpu.pipeline_mode<synchronous>, transform_indices = @transform_1, window_bounds = array<i64: 128, 128>}, {pipeline_mode = #tpu.pipeline_mode<synchronous>, transform_indices = @transform_2, window_bounds = array<i64: 1, 128>}, {pipeline_mode = #tpu.pipeline_mode<synchronous>, transform_indices = @transform_3, window_bounds = array<i64: 128, 128>}, {pipeline_mode = #tpu.pipeline_mode<synchronous>, transform_indices = @transform_4, window_bounds = array<i64: 1, 128>}, {pipeline_mode = #tpu.pipeline_mode<synchronous>, transform_indices = @transform_5, window_bounds = array<i64: 128, 4>}, {pipeline_mode = #tpu.pipeline_mode<synchronous>, transform_indices = @transform_6, window_bounds = array<i64: 1, 4>}, {transform_indices = @transform_7, window_bounds = array<i64: 256, 4>}]} {
    %c0 = arith.constant 0 : index
    %c0_0 = arith.constant 0 : index
    %0 = vector.load %arg1[%c0, %c0_0] : memref<256x128xf32, #tpu.memory_space<vmem>>, vector<256x128xf32>
    %1 = arith.truncf %0 : vector<256x128xf32> to vector<256x128xbf16>
    %c0_1 = arith.constant 0 : index
    %c0_2 = arith.constant 0 : index
    %2 = vector.load %arg2[%c0_1, %c0_2] : memref<128x128xbf16, #tpu.memory_space<vmem>>, vector<128x128xbf16>
    %cst = arith.constant dense<0.000000e+00> : vector<256x128xf32>
    %3 = tpu.matmul %1, %2, %cst {dimension_numbers = #tpu.dot_dimension_numbers<[1], [0], [0], [1], [0, 0, 1, 1], [], []>} : vector<256x128xbf16>, vector<128x128xbf16>, vector<256x128xf32> -> vector<256x128xf32>
    %c0_3 = arith.constant 0 : index
    %c0_4 = arith.constant 0 : index
    %4 = vector.load %arg3[%c0_3, %c0_4] : memref<1x128xf32, #tpu.memory_space<vmem>>, vector<1x128xf32>
    %5 = vector.broadcast %4 : vector<1x128xf32> to vector<256x128xf32>
    %6 = arith.addf %3, %5 : vector<256x128xf32>
    %cst_5 = arith.constant 0.000000e+00 : f32
    %7 = vector.broadcast %cst_5 : f32 to vector<256x128xf32>
    %8 = arith.maximumf %6, %7 : vector<256x128xf32>
    %9 = arith.truncf %8 : vector<256x128xf32> to vector<256x128xbf16>
    %c0_6 = arith.constant 0 : index
    %c0_7 = arith.constant 0 : index
    %10 = vector.load %arg4[%c0_6, %c0_7] : memref<128x128xbf16, #tpu.memory_space<vmem>>, vector<128x128xbf16>
    %cst_8 = arith.constant dense<0.000000e+00> : vector<256x128xf32>
    %11 = tpu.matmul %9, %10, %cst_8 {dimension_numbers = #tpu.dot_dimension_numbers<[1], [0], [0], [1], [0, 0, 1, 1], [], []>} : vector<256x128xbf16>, vector<128x128xbf16>, vector<256x128xf32> -> vector<256x128xf32>
    %c0_9 = arith.constant 0 : index
    %c0_10 = arith.constant 0 : index
    %12 = vector.load %arg5[%c0_9, %c0_10] : memref<1x128xf32, #tpu.memory_space<vmem>>, vector<1x128xf32>
    %13 = vector.broadcast %12 : vector<1x128xf32> to vector<256x128xf32>
    %14 = arith.addf %11, %13 : vector<256x128xf32>
    %cst_11 = arith.constant 0.000000e+00 : f32
    %15 = vector.broadcast %cst_11 : f32 to vector<256x128xf32>
    %16 = arith.maximumf %14, %15 : vector<256x128xf32>
    %17 = arith.truncf %16 : vector<256x128xf32> to vector<256x128xbf16>
    %c0_12 = arith.constant 0 : index
    %c0_13 = arith.constant 0 : index
    %18 = vector.load %arg6[%c0_12, %c0_13] : memref<128x4xbf16, #tpu.memory_space<vmem>>, vector<128x4xbf16>
    %cst_14 = arith.constant dense<0.000000e+00> : vector<256x4xf32>
    %19 = tpu.matmul %17, %18, %cst_14 {dimension_numbers = #tpu.dot_dimension_numbers<[1], [0], [0], [1], [0, 0, 1, 1], [], []>} : vector<256x128xbf16>, vector<128x4xbf16>, vector<256x4xf32> -> vector<256x4xf32>
    %c0_15 = arith.constant 0 : index
    %c0_16 = arith.constant 0 : index
    %20 = vector.load %arg7[%c0_15, %c0_16] : memref<1x4xf32, #tpu.memory_space<vmem>>, vector<1x4xf32>
    %21 = vector.broadcast %20 : vector<1x4xf32> to vector<256x4xf32>
    %22 = arith.addf %19, %21 : vector<256x4xf32>
    %23 = math.tanh %22 : vector<256x4xf32>
    %c0_17 = arith.constant 0 : index
    %c0_18 = arith.constant 0 : index
    %24 = vector.load %arg8[%c0_17, %c0_18] : memref<256x4xf32, #tpu.memory_space<vmem>>, vector<256x4xf32>
    tpu.vector_store %arg8[%c0_17, %c0_18], %23 {strides = array<i32>} : memref<256x4xf32, #tpu.memory_space<vmem>>, vector<256x4xf32>,
    return
  }
  func.func @transform_0(%arg0: i32) -> (i32, i32) {
    %c0_i32 = arith.constant 0 : i32
    %c0_i32_0 = arith.constant 0 : i32
    return %arg0, %c0_i32 : i32, i32
  }
  func.func @transform_1(%arg0: i32) -> (i32, i32) {
    %c0_i32 = arith.constant 0 : i32
    %c0_i32_0 = arith.constant 0 : i32
    %c0_i32_1 = arith.constant 0 : i32
    return %c0_i32, %c0_i32_0 : i32, i32
  }
  func.func @transform_2(%arg0: i32) -> (i32, i32) {
    %c0_i32 = arith.constant 0 : i32
    %c0_i32_0 = arith.constant 0 : i32
    %c0_i32_1 = arith.constant 0 : i32
    return %c0_i32, %c0_i32_0 : i32, i32
  }
  func.func @transform_3(%arg0: i32) -> (i32, i32) {
    %c0_i32 = arith.constant 0 : i32
    %c0_i32_0 = arith.constant 0 : i32
    %c0_i32_1 = arith.constant 0 : i32
    return %c0_i32, %c0_i32_0 : i32, i32
  }
  func.func @transform_4(%arg0: i32) -> (i32, i32) {
    %c0_i32 = arith.constant 0 : i32
    %c0_i32_0 = arith.constant 0 : i32
    %c0_i32_1 = arith.constant 0 : i32
    return %c0_i32, %c0_i32_0 : i32, i32
  }
  func.func @transform_5(%arg0: i32) -> (i32, i32) {
    %c0_i32 = arith.constant 0 : i32
    %c0_i32_0 = arith.constant 0 : i32
    %c0_i32_1 = arith.constant 0 : i32
    return %c0_i32, %c0_i32_0 : i32, i32
  }
  func.func @transform_6(%arg0: i32) -> (i32, i32) {
    %c0_i32 = arith.constant 0 : i32
    %c0_i32_0 = arith.constant 0 : i32
    %c0_i32_1 = arith.constant 0 : i32
    return %c0_i32, %c0_i32_0 : i32, i32
  }
  func.func @transform_7(%arg0: i32) -> (i32, i32) {
    %c0_i32 = arith.constant 0 : i32
    %c0_i32_0 = arith.constant 0 : i32
    return %arg0, %c0_i32 : i32, i32
  }
}

</mosaic_0001>

<llo_original>
// kernel: tpu_custom_call.1
$region0: #{tpu_custom_call.1}
  #allocation0 [shape = 'u32[]', space=smem, size = 0x4, offset = 0x4, fixed_abs, tag = 'smem constant byte address 0x4 - core index']
  #allocation1 [shape = 'u32[144,128]{1,0:T(1,128)}', space=vmem, size = 0x12000, scoped, tag = 'internal scratch']
  %s0 = inlined_call_operand.hbm [shape: f32[256,128], index: 0, kind: input, shape index: {}]
  %s1 = inlined_call_operand.vmem [shape: bf16[128,128], index: 1, kind: input, shape index: {}]
  %s2 = inlined_call_operand.vmem [shape: f32[1,128], index: 2, kind: input, shape index: {}]
  %s3 = inlined_call_operand.hbm [shape: bf16[128,128], index: 3, kind: input, shape index: {}]
  %s4 = inlined_call_operand.vmem [shape: f32[1,128], index: 4, kind: input, shape index: {}]
  %s5 = inlined_call_operand.vmem [shape: bf16[128,4], index: 5, kind: input, shape index: {}]
  %s6 = inlined_call_operand.vmem [shape: f32[1,4], index: 6, kind: input, shape index: {}]
  %s7 = inlined_call_operand.vmem [shape: f32[256,4], index: 7, kind: output, shape index: {}]
  %s8 = sld [smem:[#allocation0]]
  $region46: #{tpu_custom_call.1} parent=0
    _
  %s10 = ssub.s32 1, %s8
  %s11 = scalar_select 0, %s10, %s8
  $region1: #{tpu_custom_call.1} parent=0
    #allocation2 [shape = 'u8[131072]{0}', space=vmem, size = 0x20000, scoped, tag = 'input window, operand 0, single buffered']
    #allocation3 [shape = 's32[1]{0}', space=sflag, size = 0x4, scoped, tag = 'scoped memory for tpu_custom_call.1']
    #allocation4 [shape = 'u8[32768]{0}', space=vmem, size = 0x8000, scoped, tag = 'input window, operand 3, single buffered']
    #allocation5 [shape = 's32[1]{0}', space=sflag, size = 0x4, scoped, tag = 'scoped memory for tpu_custom_call.1']
    %12 = vsyncpa [#allocation3], 0
    %13 = vsyncpa [#allocation5], 0
    // Predicated region
    $region2: #{tpu_custom_call.1} parent=1 // pred_check
      _
    $region3: #{tpu_custom_call.1} parent=1 // pred_check_branch
      %15 = sbr.rel (0) target = $region5
    $region4: #{tpu_custom_call.1} parent=1 // pred_region
      %s17 = ssub.s32 4096, 4096
      %18 = vsyncadd [#allocation3], %s17
      %s19 = sshll.u32 [#allocation2], 4
      %s20 = int_to_ptr.vmem [resolvable:$true] %s19
      %25 = dma.hbm_to_vmem [thread:$0]  %s0, 4096, %s20, [#allocation3], 128, 128, 8
    $region5: #{tpu_custom_call.1} parent=1 // pred_fallthru
      _
    // Predicated region
    $region6: #{tpu_custom_call.1} parent=1 // pred_check
      _
    $region7: #{tpu_custom_call.1} parent=1 // pred_check_branch
      %27 = sbr.rel (0) target = $region9
    $region8: #{tpu_custom_call.1} parent=1 // pred_region
      _
    $region9: #{tpu_custom_call.1} parent=1 // pred_fallthru
      _
    // Predicated region
    $region10: #{tpu_custom_call.1} parent=1 // pred_check
      _
    $region11: #{tpu_custom_call.1} parent=1 // pred_check_branch
      %29 = sbr.rel (0) target = $region13
    $region12: #{tpu_custom_call.1} parent=1 // pred_region
      _
    $region13: #{tpu_custom_call.1} parent=1 // pred_fallthru
      _
    // Predicated region
    $region14: #{tpu_custom_call.1} parent=1 // pred_check
      _
    $region15: #{tpu_custom_call.1} parent=1 // pred_check_branch
      %31 = sbr.rel (0) target = $region17
    $region16: #{tpu_custom_call.1} parent=1 // pred_region
      %s33 = ssub.s32 1024, 1024
      %34 = vsyncadd [#allocation5], %s33
      %s35 = sshll.u32 [#allocation4], 4
      %s36 = int_to_ptr.vmem [resolvable:$true] %s35
      %41 = dma.hbm_to_vmem [thread:$0]  %s3, 1024, %s36, [#allocation5], 64, 64, 4
    $region17: #{tpu_custom_call.1} parent=1 // pred_fallthru
      _
    // Predicated region
    $region18: #{tpu_custom_call.1} parent=1 // pred_check
      _
    $region19: #{tpu_custom_call.1} parent=1 // pred_check_branch
      %43 = sbr.rel (0) target = $region21
    $region20: #{tpu_custom_call.1} parent=1 // pred_region
      _
    $region21: #{tpu_custom_call.1} parent=1 // pred_fallthru
      _
    // Predicated region
    $region22: #{tpu_custom_call.1} parent=1 // pred_check
      _
    $region23: #{tpu_custom_call.1} parent=1 // pred_check_branch
      %45 = sbr.rel (0) target = $region25
    $region24: #{tpu_custom_call.1} parent=1 // pred_region
      _
    $region25: #{tpu_custom_call.1} parent=1 // pred_fallthru
      _
    // Predicated region
    $region26: #{tpu_custom_call.1} parent=1 // pred_check
      _
    $region27: #{tpu_custom_call.1} parent=1 // pred_check_branch
      %47 = sbr.rel (0) target = $region29
    $region28: #{tpu_custom_call.1} parent=1 // pred_region
      _
    $region29: #{tpu_custom_call.1} parent=1 // pred_fallthru
      _
    // Predicated region
    $region30: #{tpu_custom_call.1} parent=1 // pred_check
      _
    $region31: #{tpu_custom_call.1} parent=1 // pred_check_branch
      %49 = sbr.rel (0) target = $region33
    $region32: #{tpu_custom_call.1} parent=1 // pred_region
      %50 = dma.done [#allocation3], 4096
    $region33: #{tpu_custom_call.1} parent=1 // pred_fallthru
      _
    // Predicated region
    $region34: #{tpu_custom_call.1} parent=1 // pred_check
      _
    $region35: #{tpu_custom_call.1} parent=1 // pred_check_branch
      %52 = sbr.rel (0) target = $region37
    $region36: #{tpu_custom_call.1} parent=1 // pred_region
      %53 = dma.done [#allocation5], 1024
    $region37: #{tpu_custom_call.1} parent=1 // pred_fallthru
      _
    %v55 = vld [vmem:[#allocation2] sm:$0xff]
    %v56 = vld [vmem:[#allocation2 + $0x8] sm:$0xff]
    %v57 = vld [vmem:[#allocation2 + $0x10] sm:$0xff]
    %v58 = vld [vmem:[#allocation2 + $0x18] sm:$0xff]
    %v59 = vld [vmem:[#allocation2 + $0x20] sm:$0xff]
    %v60 = vld [vmem:[#allocation2 + $0x28] sm:$0xff]
    %v61 = vld [vmem:[#allocation2 + $0x30] sm:$0xff]
    %v62 = vld [vmem:[#allocation2 + $0x38] sm:$0xff]
    %v63 = vld [vmem:[#allocation2 + $0x40] sm:$0xff]
    %v64 = vld [vmem:[#allocation2 + $0x48] sm:$0xff]
    %v65 = vld [vmem:[#allocation2 + $0x50] sm:$0xff]
    %v66 = vld [vmem:[#allocation2 + $0x58] sm:$0xff]
    %v67 = vld [vmem:[#allocation2 + $0x60] sm:$0xff]
    %v68 = vld [vmem:[#allocation2 + $0x68] sm:$0xff]
    %v69 = vld [vmem:[#allocation2 + $0x70] sm:$0xff]
    %v70 = vld [vmem:[#allocation2 + $0x78] sm:$0xff]
    %v71 = vld [vmem:[#allocation2 + $0x80] sm:$0xff]
    %v72 = vld [vmem:[#allocation2 + $0x88] sm:$0xff]
    %v73 = vld [vmem:[#allocation2 + $0x90] sm:$0xff]
    %v74 = vld [vmem:[#allocation2 + $0x98] sm:$0xff]
    %v75 = vld [vmem:[#allocation2 + $0xa0] sm:$0xff]
    %v76 = vld [vmem:[#allocation2 + $0xa8] sm:$0xff]
    %v77 = vld [vmem:[#allocation2 + $0xb0] sm:$0xff]
    %v78 = vld [vmem:[#allocation2 + $0xb8] sm:$0xff]
    %v79 = vld [vmem:[#allocation2 + $0xc0] sm:$0xff]
    %v80 = vld [vmem:[#allocation2 + $0xc8] sm:$0xff]
    %v81 = vld [vmem:[#allocation2 + $0xd0] sm:$0xff]
    %v82 = vld [vmem:[#allocation2 + $0xd8] sm:$0xff]
    %v83 = vld [vmem:[#allocation2 + $0xe0] sm:$0xff]
    %v84 = vld [vmem:[#allocation2 + $0xe8] sm:$0xff]
    %v85 = vld [vmem:[#allocation2 + $0xf0] sm:$0xff]
    %v86 = vld [vmem:[#allocation2 + $0xf8] sm:$0xff]
    %v87 = vpack.c.bf16 %v56, %v55
    %v88 = vpack.c.bf16 %v58, %v57
    %v89 = vpack.c.bf16 %v60, %v59
    %v90 = vpack.c.bf16 %v62, %v61
    %v91 = vpack.c.bf16 %v64, %v63
    %v92 = vpack.c.bf16 %v66, %v65
    %v93 = vpack.c.bf16 %v68, %v67
    %v94 = vpack.c.bf16 %v70, %v69
    %v95 = vpack.c.bf16 %v72, %v71
    %v96 = vpack.c.bf16 %v74, %v73
    %v97 = vpack.c.bf16 %v76, %v75
    %v98 = vpack.c.bf16 %v78, %v77
    %v99 = vpack.c.bf16 %v80, %v79
    %v100 = vpack.c.bf16 %v82, %v81
    %v101 = vpack.c.bf16 %v84, %v83
    %v102 = vpack.c.bf16 %v86, %v85
    %v103 = vld [vmem:[%s1] sm:$0xf]
    %v104 = vld [vmem:[%s1 + $0x4] sm:$0xf]
    %v105 = vld [vmem:[%s1 + $0x8] sm:$0xf]
    %v106 = vld [vmem:[%s1 + $0xc] sm:$0xf]
    %v107 = vld [vmem:[%s1 + $0x10] sm:$0xf]
    %v108 = vld [vmem:[%s1 + $0x14] sm:$0xf]
    %v109 = vld [vmem:[%s1 + $0x18] sm:$0xf]
    %v110 = vld [vmem:[%s1 + $0x1c] sm:$0xf]
    %v111 = vld [vmem:[%s1 + $0x20] sm:$0xf]
    %v112 = vld [vmem:[%s1 + $0x24] sm:$0xf]
    %v113 = vld [vmem:[%s1 + $0x28] sm:$0xf]
    %v114 = vld [vmem:[%s1 + $0x2c] sm:$0xf]
    %v115 = vld [vmem:[%s1 + $0x30] sm:$0xf]
    %v116 = vld [vmem:[%s1 + $0x34] sm:$0xf]
    %v117 = vld [vmem:[%s1 + $0x38] sm:$0xf]
    %v118 = vld [vmem:[%s1 + $0x3c] sm:$0xf]
    %v119 = vld [vmem:[%s2] sm:$0x1]
    %v121 = vlaneseq
    %v122 = vshrl.u32 %v121, 7
    %v123 = vsub.s32 0, %v122
    %v124 = vrot.slane %v119, %v123
    %v142 = vunpack.c.l.b16 %v103
    %v143 = vunpack.c.l.b16 %v104
    %v144 = vunpack.c.l.b16 %v105
    %v145 = vunpack.c.l.b16 %v106
    %v146 = vunpack.c.l.b16 %v107
    %v147 = vunpack.c.l.b16 %v108
    %v148 = vunpack.c.l.b16 %v109
    %v149 = vunpack.c.l.b16 %v110
    %v150 = vunpack.c.l.b16 %v111
    %v151 = vunpack.c.l.b16 %v112
    %v152 = vunpack.c.l.b16 %v113
    %v153 = vunpack.c.l.b16 %v114
    %v154 = vunpack.c.l.b16 %v115
    %v155 = vunpack.c.l.b16 %v116
    %v156 = vunpack.c.l.b16 %v117
    %v157 = vunpack.c.l.b16 %v118
    %v158 = vpack.c.b16 %v143, %v142
    %v159 = vpack.c.b16 %v145, %v144
    %v160 = vpack.c.b16 %v147, %v146
    %v161 = vpack.c.b16 %v149, %v148
    %v162 = vpack.c.b16 %v151, %v150
    %v163 = vpack.c.b16 %v153, %v152
    %v164 = vpack.c.b16 %v155, %v154
    %v165 = vpack.c.b16 %v157, %v156
    %174 = vmatprep.subr.bf16.mxu0 0
    %175 = vmatpush1.bf16.msra.mxu0 %v165
    %176 = vmatprep.subr.bf16.mxu0 0
    %177 = vmatpush1.bf16.msra.mxu0 %v164
    %178 = vmatprep.subr.bf16.mxu0 0
    %179 = vmatpush1.bf16.msra.mxu0 %v163
    %180 = vmatprep.subr.bf16.mxu0 0
    %181 = vmatpush1.bf16.msra.mxu0 %v162
    %182 = vmatprep.subr.bf16.mxu0 0
    %183 = vmatpush1.bf16.msra.mxu0 %v161
    %184 = vmatprep.subr.bf16.mxu0 0
    %185 = vmatpush1.bf16.msra.mxu0 %v160
    %186 = vmatprep.subr.bf16.mxu0 0
    %187 = vmatpush1.bf16.msra.mxu0 %v159
    %188 = vmatprep.subr.bf16.mxu0 0
    %189 = vmatpush1.bf16.msra.mxu0 %v158
    %190 = vmatprep.subr.bf16.mxu0 0
    %191 = vmatpush2.bf16.msra.mxu0 0
    %192 = vmatprep.subr.bf16.mxu0 0
    %193 = vmatpush2.bf16.msra.mxu0 0
    %194 = vmatprep.subr.bf16.mxu0 0
    %195 = vmatpush2.bf16.msra.mxu0 0
    %196 = vmatprep.subr.bf16.mxu0 0
    %197 = vmatpush2.bf16.msra.mxu0 0
    %198 = vmatprep.subr.bf16.mxu0 0
    %199 = vmatpush2.bf16.msra.mxu0 0
    %200 = vmatprep.subr.bf16.mxu0 0
    %201 = vmatpush2.bf16.msra.mxu0 0
    %202 = vmatprep.subr.bf16.mxu0 0
    %203 = vmatpush2.bf16.msra.mxu0 0
    %204 = vmatprep.subr.bf16.mxu0 0
    %205 = vmatpush2.bf16.msra.mxu0 0
    %206 = vmatprep.mubr.bf16.mxu0 0
    %207 = vmatmul.mubr.bf16.gmra.mxu0 %v87
    %v208 = vpop.f32.mrf.mxu0
    %v209 = vadd.f32 %v124, %v208
    %v210 = vpop.f32.mrf.mxu0
    %v211 = vpop.f32.mrf.mxu0
    %v212 = vadd.f32 %v124, %v211
    %v213 = vpop.f32.mrf.mxu0
    %214 = vmatprep.mubr.bf16.mxu0 0
    %215 = vmatmul.mubr.bf16.gmra.mxu0 %v88
    %v216 = vpop.f32.mrf.mxu0
    %v217 = vadd.f32 %v124, %v216
    %v218 = vpop.f32.mrf.mxu0
    %v219 = vpop.f32.mrf.mxu0
    %v220 = vadd.f32 %v124, %v219
    %v221 = vpop.f32.mrf.mxu0
    %222 = vmatprep.mubr.bf16.mxu0 0
    %223 = vmatmul.mubr.bf16.gmra.mxu0 %v89
    %v224 = vpop.f32.mrf.mxu0
    %v225 = vadd.f32 %v124, %v224
    %v226 = vpop.f32.mrf.mxu0
    %v227 = vpop.f32.mrf.mxu0
    %v228 = vadd.f32 %v124, %v227
    %v229 = vpop.f32.mrf.mxu0
    %230 = vmatprep.mubr.bf16.mxu0 0
    %231 = vmatmul.mubr.bf16.gmra.mxu0 %v90
    %v232 = vpop.f32.mrf.mxu0
    %v233 = vadd.f32 %v124, %v232
    %v234 = vpop.f32.mrf.mxu0
    %v235 = vpop.f32.mrf.mxu0
    %v236 = vadd.f32 %v124, %v235
    %v237 = vpop.f32.mrf.mxu0
    %238 = vmatprep.mubr.bf16.mxu0 0
    %239 = vmatmul.mubr.bf16.gmra.mxu0 %v91
    %v240 = vpop.f32.mrf.mxu0
    %v241 = vadd.f32 %v124, %v240
    %v242 = vpop.f32.mrf.mxu0
    %v243 = vpop.f32.mrf.mxu0
    %v244 = vadd.f32 %v124, %v243
    %v245 = vpop.f32.mrf.mxu0
    %246 = vmatprep.mubr.bf16.mxu0 0
    %247 = vmatmul.mubr.bf16.gmra.mxu0 %v92
    %v248 = vpop.f32.mrf.mxu0
    %v249 = vadd.f32 %v124, %v248
    %v250 = vpop.f32.mrf.mxu0
    %v251 = vpop.f32.mrf.mxu0
    %v252 = vadd.f32 %v124, %v251
    %v253 = vpop.f32.mrf.mxu0
    %254 = vmatprep.mubr.bf16.mxu0 0
    %255 = vmatmul.mubr.bf16.gmra.mxu0 %v93
    %v256 = vpop.f32.mrf.mxu0
    %v257 = vadd.f32 %v124, %v256
    %v258 = vpop.f32.mrf.mxu0
    %v259 = vpop.f32.mrf.mxu0
    %v260 = vadd.f32 %v124, %v259
    %v261 = vpop.f32.mrf.mxu0
    %262 = vmatprep.mubr.bf16.mxu0 0
    %263 = vmatmul.mubr.bf16.gmra.mxu0 %v94
    %v264 = vpop.f32.mrf.mxu0
    %v265 = vadd.f32 %v124, %v264
    %v266 = vpop.f32.mrf.mxu0
    %v267 = vpop.f32.mrf.mxu0
    %v268 = vadd.f32 %v124, %v267
    %v269 = vpop.f32.mrf.mxu0
    %270 = vmatprep.mubr.bf16.mxu0 0
    %271 = vmatmul.mubr.bf16.gmra.mxu0 %v95
    %v272 = vpop.f32.mrf.mxu0
    %v273 = vadd.f32 %v124, %v272
    %v274 = vpop.f32.mrf.mxu0
    %v275 = vpop.f32.mrf.mxu0
    %v276 = vadd.f32 %v124, %v275
    %v277 = vpop.f32.mrf.mxu0
    %278 = vmatprep.mubr.bf16.mxu0 0
    %279 = vmatmul.mubr.bf16.gmra.mxu0 %v96
    %v280 = vpop.f32.mrf.mxu0
    %v281 = vadd.f32 %v124, %v280
    %v282 = vpop.f32.mrf.mxu0
    %v283 = vpop.f32.mrf.mxu0
    %v284 = vadd.f32 %v124, %v283
    %v285 = vpop.f32.mrf.mxu0
    %286 = vmatprep.mubr.bf16.mxu0 0
    %287 = vmatmul.mubr.bf16.gmra.mxu0 %v97
    %v288 = vpop.f32.mrf.mxu0
    %v289 = vadd.f32 %v124, %v288
    %v290 = vpop.f32.mrf.mxu0
    %v291 = vpop.f32.mrf.mxu0
    %v292 = vadd.f32 %v124, %v291
    %v293 = vpop.f32.mrf.mxu0
    %294 = vmatprep.mubr.bf16.mxu0 0
    %295 = vmatmul.mubr.bf16.gmra.mxu0 %v98
    %v296 = vpop.f32.mrf.mxu0
    %v297 = vadd.f32 %v124, %v296
    %v298 = vpop.f32.mrf.mxu0
    %v299 = vpop.f32.mrf.mxu0
    %v300 = vadd.f32 %v124, %v299
    %v301 = vpop.f32.mrf.mxu0
    %302 = vmatprep.mubr.bf16.mxu0 0
    %303 = vmatmul.mubr.bf16.gmra.mxu0 %v99
    %v304 = vpop.f32.mrf.mxu0
    %v305 = vadd.f32 %v124, %v304
    %v306 = vpop.f32.mrf.mxu0
    %v307 = vpop.f32.mrf.mxu0
    %v308 = vadd.f32 %v124, %v307
    %v309 = vpop.f32.mrf.mxu0
    %310 = vmatprep.mubr.bf16.mxu0 0
    %311 = vmatmul.mubr.bf16.gmra.mxu0 %v100
    %v312 = vpop.f32.mrf.mxu0
    %v313 = vadd.f32 %v124, %v312
    %v314 = vpop.f32.mrf.mxu0
    %v315 = vpop.f32.mrf.mxu0
    %v316 = vadd.f32 %v124, %v315
    %v317 = vpop.f32.mrf.mxu0
    %318 = vmatprep.mubr.bf16.mxu0 0
    %319 = vmatmul.mubr.bf16.gmra.mxu0 %v101
    %v320 = vpop.f32.mrf.mxu0
    %v321 = vadd.f32 %v124, %v320
    %v322 = vpop.f32.mrf.mxu0
    %v323 = vpop.f32.mrf.mxu0
    %v324 = vadd.f32 %v124, %v323
    %v325 = vpop.f32.mrf.mxu0
    %326 = vmatprep.mubr.bf16.mxu0 0
    %327 = vmatmul.mubr.bf16.gmra.mxu0 %v102
    %v328 = vpop.f32.mrf.mxu0
    %v329 = vadd.f32 %v124, %v328
    %v330 = vpop.f32.mrf.mxu0
    %v331 = vpop.f32.mrf.mxu0
    %v332 = vadd.f32 %v124, %v331
    %v333 = vpop.f32.mrf.mxu0
    %334 = vdwg.mxu0
    %v335 = vmax.f32 %v209, 0.0
    %v336 = vmax.f32 %v212, 0.0
    %v337 = vmax.f32 %v217, 0.0
    %v338 = vmax.f32 %v220, 0.0
    %v339 = vmax.f32 %v225, 0.0
    %v340 = vmax.f32 %v228, 0.0
    %v341 = vmax.f32 %v233, 0.0
    %v342 = vmax.f32 %v236, 0.0
    %v343 = vmax.f32 %v241, 0.0
    %v344 = vmax.f32 %v244, 0.0
    %v345 = vmax.f32 %v249, 0.0
    %v346 = vmax.f32 %v252, 0.0
    %v347 = vmax.f32 %v257, 0.0
    %v348 = vmax.f32 %v260, 0.0
    %v349 = vmax.f32 %v265, 0.0
    %v350 = vmax.f32 %v268, 0.0
    %v351 = vmax.f32 %v273, 0.0
    %v352 = vmax.f32 %v276, 0.0
    %v353 = vmax.f32 %v281, 0.0
    %v354 = vmax.f32 %v284, 0.0
    %v355 = vmax.f32 %v289, 0.0
    %v356 = vmax.f32 %v292, 0.0
    %v357 = vmax.f32 %v297, 0.0
    %v358 = vmax.f32 %v300, 0.0
    %v359 = vmax.f32 %v305, 0.0
    %v360 = vmax.f32 %v308, 0.0
    %v361 = vmax.f32 %v313, 0.0
    %v362 = vmax.f32 %v316, 0.0
    %v363 = vmax.f32 %v321, 0.0
    %v364 = vmax.f32 %v324, 0.0
    %v365 = vmax.f32 %v329, 0.0
    %v366 = vmax.f32 %v332, 0.0
    %v367 = vpack.c.bf16 %v336, %v335
    %v368 = vpack.c.bf16 %v338, %v337
    %v369 = vpack.c.bf16 %v340, %v339
    %v370 = vpack.c.bf16 %v342, %v341
    %v371 = vpack.c.bf16 %v344, %v343
    %v372 = vpack.c.bf16 %v346, %v345
    %v373 = vpack.c.bf16 %v348, %v347
    %v374 = vpack.c.bf16 %v350, %v349
    %v375 = vpack.c.bf16 %v352, %v351
    %v376 = vpack.c.bf16 %v354, %v353
    %v377 = vpack.c.bf16 %v356, %v355
    %v378 = vpack.c.bf16 %v358, %v357
    %v379 = vpack.c.bf16 %v360, %v359
    %v380 = vpack.c.bf16 %v362, %v361
    %v381 = vpack.c.bf16 %v364, %v363
    %v382 = vpack.c.bf16 %v366, %v365
    %v383 = vld [vmem:[#allocation4] sm:$0xf]
    %v384 = vld [vmem:[#allocation4 + $0x4] sm:$0xf]
    %v385 = vld [vmem:[#allocation4 + $0x8] sm:$0xf]
    %v386 = vld [vmem:[#allocation4 + $0xc] sm:$0xf]
    %v387 = vld [vmem:[#allocation4 + $0x10] sm:$0xf]
    %v388 = vld [vmem:[#allocation4 + $0x14] sm:$0xf]
    %v389 = vld [vmem:[#allocation4 + $0x18] sm:$0xf]
    %v390 = vld [vmem:[#allocation4 + $0x1c] sm:$0xf]
    %v391 = vld [vmem:[#allocation4 + $0x20] sm:$0xf]
    %v392 = vld [vmem:[#allocation4 + $0x24] sm:$0xf]
    %v393 = vld [vmem:[#allocation4 + $0x28] sm:$0xf]
    %v394 = vld [vmem:[#allocation4 + $0x2c] sm:$0xf]
    %v395 = vld [vmem:[#allocation4 + $0x30] sm:$0xf]
    %v396 = vld [vmem:[#allocation4 + $0x34] sm:$0xf]
    %v397 = vld [vmem:[#allocation4 + $0x38] sm:$0xf]
    %v398 = vld [vmem:[#allocation4 + $0x3c] sm:$0xf]
    %v399 = vld [vmem:[%s4] sm:$0x1]
    %v401 = vlaneseq
    %v402 = vshrl.u32 %v401, 7
    %v403 = vsub.s32 0, %v402
    %v404 = vrot.slane %v399, %v403
    %v422 = vunpack.c.l.b16 %v383
    %v423 = vunpack.c.l.b16 %v384
    %v424 = vunpack.c.l.b16 %v385
    %v425 = vunpack.c.l.b16 %v386
    %v426 = vunpack.c.l.b16 %v387
    %v427 = vunpack.c.l.b16 %v388
    %v428 = vunpack.c.l.b16 %v389
    %v429 = vunpack.c.l.b16 %v390
    %v430 = vunpack.c.l.b16 %v391
    %v431 = vunpack.c.l.b16 %v392
    %v432 = vunpack.c.l.b16 %v393
    %v433 = vunpack.c.l.b16 %v394
    %v434 = vunpack.c.l.b16 %v395
    %v435 = vunpack.c.l.b16 %v396
    %v436 = vunpack.c.l.b16 %v397
    %v437 = vunpack.c.l.b16 %v398
    %v438 = vpack.c.b16 %v423, %v422
    %v439 = vpack.c.b16 %v425, %v424
    %v440 = vpack.c.b16 %v427, %v426
    %v441 = vpack.c.b16 %v429, %v428
    %v442 = vpack.c.b16 %v431, %v430
    %v443 = vpack.c.b16 %v433, %v432
    %v444 = vpack.c.b16 %v435, %v434
    %v445 = vpack.c.b16 %v437, %v436
    %454 = vmatprep.subr.bf16.mxu0 0
    %455 = vmatpush1.bf16.msra.mxu0 %v445
    %456 = vmatprep.subr.bf16.mxu0 0
    %457 = vmatpush1.bf16.msra.mxu0 %v444
    %458 = vmatprep.subr.bf16.mxu0 0
    %459 = vmatpush1.bf16.msra.mxu0 %v443
    %460 = vmatprep.subr.bf16.mxu0 0
    %461 = vmatpush1.bf16.msra.mxu0 %v442
    %462 = vmatprep.subr.bf16.mxu0 0
    %463 = vmatpush1.bf16.msra.mxu0 %v441
    %464 = vmatprep.subr.bf16.mxu0 0
    %465 = vmatpush1.bf16.msra.mxu0 %v440
    %466 = vmatprep.subr.bf16.mxu0 0
    %467 = vmatpush1.bf16.msra.mxu0 %v439
    %468 = vmatprep.subr.bf16.mxu0 0
    %469 = vmatpush1.bf16.msra.mxu0 %v438
    %470 = vmatprep.subr.bf16.mxu0 0
    %471 = vmatpush2.bf16.msra.mxu0 0
    %472 = vmatprep.subr.bf16.mxu0 0
    %473 = vmatpush2.bf16.msra.mxu0 0
    %474 = vmatprep.subr.bf16.mxu0 0
    %475 = vmatpush2.bf16.msra.mxu0 0
    %476 = vmatprep.subr.bf16.mxu0 0
    %477 = vmatpush2.bf16.msra.mxu0 0
    %478 = vmatprep.subr.bf16.mxu0 0
    %479 = vmatpush2.bf16.msra.mxu0 0
    %480 = vmatprep.subr.bf16.mxu0 0
    %481 = vmatpush2.bf16.msra.mxu0 0
    %482 = vmatprep.subr.bf16.mxu0 0
    %483 = vmatpush2.bf16.msra.mxu0 0
    %484 = vmatprep.subr.bf16.mxu0 0
    %485 = vmatpush2.bf16.msra.mxu0 0
    %486 = vmatprep.mubr.bf16.mxu0 0
    %487 = vmatmul.mubr.bf16.gmra.mxu0 %v367
    %v488 = vpop.f32.mrf.mxu0
    %v489 = vadd.f32 %v404, %v488
    %v490 = vpop.f32.mrf.mxu0
    %v491 = vpop.f32.mrf.mxu0
    %v492 = vadd.f32 %v404, %v491
    %v493 = vpop.f32.mrf.mxu0
    %494 = vmatprep.mubr.bf16.mxu0 0
    %495 = vmatmul.mubr.bf16.gmra.mxu0 %v368
    %v496 = vpop.f32.mrf.mxu0
    %v497 = vadd.f32 %v404, %v496
    %v498 = vpop.f32.mrf.mxu0
    %v499 = vpop.f32.mrf.mxu0
    %v500 = vadd.f32 %v404, %v499
    %v501 = vpop.f32.mrf.mxu0
    %502 = vmatprep.mubr.bf16.mxu0 0
    %503 = vmatmul.mubr.bf16.gmra.mxu0 %v369
    %v504 = vpop.f32.mrf.mxu0
    %v505 = vadd.f32 %v404, %v504
    %v506 = vpop.f32.mrf.mxu0
    %v507 = vpop.f32.mrf.mxu0
    %v508 = vadd.f32 %v404, %v507
    %v509 = vpop.f32.mrf.mxu0
    %510 = vmatprep.mubr.bf16.mxu0 0
    %511 = vmatmul.mubr.bf16.gmra.mxu0 %v370
    %v512 = vpop.f32.mrf.mxu0
    %v513 = vadd.f32 %v404, %v512
    %v514 = vpop.f32.mrf.mxu0
    %v515 = vpop.f32.mrf.mxu0
    %v516 = vadd.f32 %v404, %v515
    %v517 = vpop.f32.mrf.mxu0
    %518 = vmatprep.mubr.bf16.mxu0 0
    %519 = vmatmul.mubr.bf16.gmra.mxu0 %v371
    %v520 = vpop.f32.mrf.mxu0
    %v521 = vadd.f32 %v404, %v520
    %v522 = vpop.f32.mrf.mxu0
    %v523 = vpop.f32.mrf.mxu0
    %v524 = vadd.f32 %v404, %v523
    %v525 = vpop.f32.mrf.mxu0
    %526 = vmatprep.mubr.bf16.mxu0 0
    %527 = vmatmul.mubr.bf16.gmra.mxu0 %v372
    %v528 = vpop.f32.mrf.mxu0
    %v529 = vadd.f32 %v404, %v528
    %v530 = vpop.f32.mrf.mxu0
    %v531 = vpop.f32.mrf.mxu0
    %v532 = vadd.f32 %v404, %v531
    %v533 = vpop.f32.mrf.mxu0
    %534 = vmatprep.mubr.bf16.mxu0 0
    %535 = vmatmul.mubr.bf16.gmra.mxu0 %v373
    %v536 = vpop.f32.mrf.mxu0
    %v537 = vadd.f32 %v404, %v536
    %v538 = vpop.f32.mrf.mxu0
    %v539 = vpop.f32.mrf.mxu0
    %v540 = vadd.f32 %v404, %v539
    %v541 = vpop.f32.mrf.mxu0
    %542 = vmatprep.mubr.bf16.mxu0 0
    %543 = vmatmul.mubr.bf16.gmra.mxu0 %v374
    %v544 = vpop.f32.mrf.mxu0
    %v545 = vadd.f32 %v404, %v544
    %v546 = vpop.f32.mrf.mxu0
    %v547 = vpop.f32.mrf.mxu0
    %v548 = vadd.f32 %v404, %v547
    %v549 = vpop.f32.mrf.mxu0
    %550 = vmatprep.mubr.bf16.mxu0 0
    %551 = vmatmul.mubr.bf16.gmra.mxu0 %v375
    %v552 = vpop.f32.mrf.mxu0
    %v553 = vadd.f32 %v404, %v552
    %v554 = vpop.f32.mrf.mxu0
    %v555 = vpop.f32.mrf.mxu0
    %v556 = vadd.f32 %v404, %v555
    %v557 = vpop.f32.mrf.mxu0
    %558 = vmatprep.mubr.bf16.mxu0 0
    %559 = vmatmul.mubr.bf16.gmra.mxu0 %v376
    %v560 = vpop.f32.mrf.mxu0
    %v561 = vadd.f32 %v404, %v560
    %v562 = vpop.f32.mrf.mxu0
    %v563 = vpop.f32.mrf.mxu0
    %v564 = vadd.f32 %v404, %v563
    %v565 = vpop.f32.mrf.mxu0
    %566 = vmatprep.mubr.bf16.mxu0 0
    %567 = vmatmul.mubr.bf16.gmra.mxu0 %v377
    %v568 = vpop.f32.mrf.mxu0
    %v569 = vadd.f32 %v404, %v568
    %v570 = vpop.f32.mrf.mxu0
    %v571 = vpop.f32.mrf.mxu0
    %v572 = vadd.f32 %v404, %v571
    %v573 = vpop.f32.mrf.mxu0
    %574 = vmatprep.mubr.bf16.mxu0 0
    %575 = vmatmul.mubr.bf16.gmra.mxu0 %v378
    %v576 = vpop.f32.mrf.mxu0
    %v577 = vadd.f32 %v404, %v576
    %v578 = vpop.f32.mrf.mxu0
    %v579 = vpop.f32.mrf.mxu0
    %v580 = vadd.f32 %v404, %v579
    %v581 = vpop.f32.mrf.mxu0
    %582 = vmatprep.mubr.bf16.mxu0 0
    %583 = vmatmul.mubr.bf16.gmra.mxu0 %v379
    %v584 = vpop.f32.mrf.mxu0
    %v585 = vadd.f32 %v404, %v584
    %v586 = vpop.f32.mrf.mxu0
    %v587 = vpop.f32.mrf.mxu0
    %v588 = vadd.f32 %v404, %v587
    %v589 = vpop.f32.mrf.mxu0
    %590 = vmatprep.mubr.bf16.mxu0 0
    %591 = vmatmul.mubr.bf16.gmra.mxu0 %v380
    %v592 = vpop.f32.mrf.mxu0
    %v593 = vadd.f32 %v404, %v592
    %v594 = vpop.f32.mrf.mxu0
    %v595 = vpop.f32.mrf.mxu0
    %v596 = vadd.f32 %v404, %v595
    %v597 = vpop.f32.mrf.mxu0
    %598 = vmatprep.mubr.bf16.mxu0 0
    %599 = vmatmul.mubr.bf16.gmra.mxu0 %v381
    %v600 = vpop.f32.mrf.mxu0
    %v601 = vadd.f32 %v404, %v600
    %v602 = vpop.f32.mrf.mxu0
    %v603 = vpop.f32.mrf.mxu0
    %v604 = vadd.f32 %v404, %v603
    %v605 = vpop.f32.mrf.mxu0
    %606 = vmatprep.mubr.bf16.mxu0 0
    %607 = vmatmul.mubr.bf16.gmra.mxu0 %v382
    %v608 = vpop.f32.mrf.mxu0
    %v609 = vadd.f32 %v404, %v608
    %v610 = vpop.f32.mrf.mxu0
    %v611 = vpop.f32.mrf.mxu0
    %v612 = vadd.f32 %v404, %v611
    %v613 = vpop.f32.mrf.mxu0
    %614 = vdwg.mxu0
    %v615 = vmax.f32 %v489, 0.0
    %v616 = vmax.f32 %v492, 0.0
    %v617 = vmax.f32 %v497, 0.0
    %v618 = vmax.f32 %v500, 0.0
    %v619 = vmax.f32 %v505, 0.0
    %v620 = vmax.f32 %v508, 0.0
    %v621 = vmax.f32 %v513, 0.0
    %v622 = vmax.f32 %v516, 0.0
    %v623 = vmax.f32 %v521, 0.0
    %v624 = vmax.f32 %v524, 0.0
    %v625 = vmax.f32 %v529, 0.0
    %v626 = vmax.f32 %v532, 0.0
    %v627 = vmax.f32 %v537, 0.0
    %v628 = vmax.f32 %v540, 0.0
    %v629 = vmax.f32 %v545, 0.0
    %v630 = vmax.f32 %v548, 0.0
    %v631 = vmax.f32 %v553, 0.0
    %v632 = vmax.f32 %v556, 0.0
    %v633 = vmax.f32 %v561, 0.0
    %v634 = vmax.f32 %v564, 0.0
    %v635 = vmax.f32 %v569, 0.0
    %v636 = vmax.f32 %v572, 0.0
    %v637 = vmax.f32 %v577, 0.0
    %v638 = vmax.f32 %v580, 0.0
    %v639 = vmax.f32 %v585, 0.0
    %v640 = vmax.f32 %v588, 0.0
    %v641 = vmax.f32 %v593, 0.0
    %v642 = vmax.f32 %v596, 0.0
    %v643 = vmax.f32 %v601, 0.0
    %v644 = vmax.f32 %v604, 0.0
    %v645 = vmax.f32 %v609, 0.0
    %v646 = vmax.f32 %v612, 0.0
    %v647 = vpack.c.bf16 %v616, %v615
    %v648 = vpack.c.bf16 %v618, %v617
    %v649 = vpack.c.bf16 %v620, %v619
    %v650 = vpack.c.bf16 %v622, %v621
    %v651 = vpack.c.bf16 %v624, %v623
    %v652 = vpack.c.bf16 %v626, %v625
    %v653 = vpack.c.bf16 %v628, %v627
    %v654 = vpack.c.bf16 %v630, %v629
    %v655 = vpack.c.bf16 %v632, %v631
    %v656 = vpack.c.bf16 %v634, %v633
    %v657 = vpack.c.bf16 %v636, %v635
    %v658 = vpack.c.bf16 %v638, %v637
    %v659 = vpack.c.bf16 %v640, %v639
    %v660 = vpack.c.bf16 %v642, %v641
    %v661 = vpack.c.bf16 %v644, %v643
    %v662 = vpack.c.bf16 %v646, %v645
    %v663 = vld [vmem:[%s5] sm:$0xf]
    %v664 = vld [vmem:[%s5 + $0x4] sm:$0xf]
    %v665 = vld [vmem:[%s5 + $0x8] sm:$0xf]
    %v666 = vld [vmem:[%s5 + $0xc] sm:$0xf]
    %v667 = vld [vmem:[%s5 + $0x10] sm:$0xf]
    %v668 = vld [vmem:[%s5 + $0x14] sm:$0xf]
    %v669 = vld [vmem:[%s5 + $0x18] sm:$0xf]
    %v670 = vld [vmem:[%s5 + $0x1c] sm:$0xf]
    %v671 = vld [vmem:[%s5 + $0x20] sm:$0xf]
    %v672 = vld [vmem:[%s5 + $0x24] sm:$0xf]
    %v673 = vld [vmem:[%s5 + $0x28] sm:$0xf]
    %v674 = vld [vmem:[%s5 + $0x2c] sm:$0xf]
    %v675 = vld [vmem:[%s5 + $0x30] sm:$0xf]
    %v676 = vld [vmem:[%s5 + $0x34] sm:$0xf]
    %v677 = vld [vmem:[%s5 + $0x38] sm:$0xf]
    %v678 = vld [vmem:[%s5 + $0x3c] sm:$0xf]
    %v679 = vld [vmem:[%s6] sm:$0x1]
    %v681 = vlaneseq
    %v682 = vshrl.u32 %v681, 7
    %v683 = vsub.s32 0, %v682
    %v684 = vrot.slane %v679, %v683
    %v702 = vunpack.c.l.b16 %v663
    %v703 = vunpack.c.l.b16 %v664
    %v704 = vunpack.c.l.b16 %v665
    %v705 = vunpack.c.l.b16 %v666
    %v706 = vunpack.c.l.b16 %v667
    %v707 = vunpack.c.l.b16 %v668
    %v708 = vunpack.c.l.b16 %v669
    %v709 = vunpack.c.l.b16 %v670
    %v710 = vunpack.c.l.b16 %v671
    %v711 = vunpack.c.l.b16 %v672
    %v712 = vunpack.c.l.b16 %v673
    %v713 = vunpack.c.l.b16 %v674
    %v714 = vunpack.c.l.b16 %v675
    %v715 = vunpack.c.l.b16 %v676
    %v716 = vunpack.c.l.b16 %v677
    %v717 = vunpack.c.l.b16 %v678
    %v718 = vpack.c.b16 %v703, %v702
    %v719 = vpack.c.b16 %v705, %v704
    %v720 = vpack.c.b16 %v707, %v706
    %v721 = vpack.c.b16 %v709, %v708
    %v722 = vpack.c.b16 %v711, %v710
    %v723 = vpack.c.b16 %v713, %v712
    %v724 = vpack.c.b16 %v715, %v714
    %v725 = vpack.c.b16 %v717, %v716
    %734 = vmatprep.subr.bf16.mxu0 0
    %735 = vmatpush1.bf16.msra.mxu0 %v725
    %736 = vmatprep.subr.bf16.mxu0 0
    %737 = vmatpush1.bf16.msra.mxu0 %v724
    %738 = vmatprep.subr.bf16.mxu0 0
    %739 = vmatpush1.bf16.msra.mxu0 %v723
    %740 = vmatprep.subr.bf16.mxu0 0
    %741 = vmatpush1.bf16.msra.mxu0 %v722
    %742 = vmatprep.subr.bf16.mxu0 0
    %743 = vmatpush1.bf16.msra.mxu0 %v721
    %744 = vmatprep.subr.bf16.mxu0 0
    %745 = vmatpush1.bf16.msra.mxu0 %v720
    %746 = vmatprep.subr.bf16.mxu0 0
    %747 = vmatpush1.bf16.msra.mxu0 %v719
    %748 = vmatprep.subr.bf16.mxu0 0
    %749 = vmatpush1.bf16.msra.mxu0 %v718
    %750 = vmatprep.subr.bf16.mxu0 0
    %751 = vmatpush2.bf16.msra.mxu0 0
    %752 = vmatprep.subr.bf16.mxu0 0
    %753 = vmatpush2.bf16.msra.mxu0 0
    %754 = vmatprep.subr.bf16.mxu0 0
    %755 = vmatpush2.bf16.msra.mxu0 0
    %756 = vmatprep.subr.bf16.mxu0 0
    %757 = vmatpush2.bf16.msra.mxu0 0
    %758 = vmatprep.subr.bf16.mxu0 0
    %759 = vmatpush2.bf16.msra.mxu0 0
    %760 = vmatprep.subr.bf16.mxu0 0
    %761 = vmatpush2.bf16.msra.mxu0 0
    %762 = vmatprep.subr.bf16.mxu0 0
    %763 = vmatpush2.bf16.msra.mxu0 0
    %764 = vmatprep.subr.bf16.mxu0 0
    %765 = vmatpush2.bf16.msra.mxu0 0
    %766 = vmatprep.mubr.bf16.mxu0 0
    %767 = vmatmul.mubr.bf16.gmra.mxu0 %v647
    %v768 = vpop.f32.mrf.mxu0
    %v769 = vadd.f32 %v684, %v768
    %v770 = vpop.f32.mrf.mxu0
    %v771 = vpop.f32.mrf.mxu0
    %v772 = vadd.f32 %v684, %v771
    %v773 = vpop.f32.mrf.mxu0
    %774 = vmatprep.mubr.bf16.mxu0 0
    %775 = vmatmul.mubr.bf16.gmra.mxu0 %v648
    %v776 = vpop.f32.mrf.mxu0
    %v777 = vadd.f32 %v684, %v776
    %v778 = vpop.f32.mrf.mxu0
    %v779 = vpop.f32.mrf.mxu0
    %v780 = vadd.f32 %v684, %v779
    %v781 = vpop.f32.mrf.mxu0
    %782 = vmatprep.mubr.bf16.mxu0 0
    %783 = vmatmul.mubr.bf16.gmra.mxu0 %v649
    %v784 = vpop.f32.mrf.mxu0
    %v785 = vadd.f32 %v684, %v784
    %v786 = vpop.f32.mrf.mxu0
    %v787 = vpop.f32.mrf.mxu0
    %v788 = vadd.f32 %v684, %v787
    %v789 = vpop.f32.mrf.mxu0
    %790 = vmatprep.mubr.bf16.mxu0 0
    %791 = vmatmul.mubr.bf16.gmra.mxu0 %v650
    %v792 = vpop.f32.mrf.mxu0
    %v793 = vadd.f32 %v684, %v792
    %v794 = vpop.f32.mrf.mxu0
    %v795 = vpop.f32.mrf.mxu0
    %v796 = vadd.f32 %v684, %v795
    %v797 = vpop.f32.mrf.mxu0
    %798 = vmatprep.mubr.bf16.mxu0 0
    %799 = vmatmul.mubr.bf16.gmra.mxu0 %v651
    %v800 = vpop.f32.mrf.mxu0
    %v801 = vadd.f32 %v684, %v800
    %v802 = vpop.f32.mrf.mxu0
    %v803 = vpop.f32.mrf.mxu0
    %v804 = vadd.f32 %v684, %v803
    %v805 = vpop.f32.mrf.mxu0
    %806 = vmatprep.mubr.bf16.mxu0 0
    %807 = vmatmul.mubr.bf16.gmra.mxu0 %v652
    %v808 = vpop.f32.mrf.mxu0
    %v809 = vadd.f32 %v684, %v808
    %v810 = vpop.f32.mrf.mxu0
    %v811 = vpop.f32.mrf.mxu0
    %v812 = vadd.f32 %v684, %v811
    %v813 = vpop.f32.mrf.mxu0
    %814 = vmatprep.mubr.bf16.mxu0 0
    %815 = vmatmul.mubr.bf16.gmra.mxu0 %v653
    %v816 = vpop.f32.mrf.mxu0
    %v817 = vadd.f32 %v684, %v816
    %v818 = vpop.f32.mrf.mxu0
    %v819 = vpop.f32.mrf.mxu0
    %v820 = vadd.f32 %v684, %v819
    %v821 = vpop.f32.mrf.mxu0
    %822 = vmatprep.mubr.bf16.mxu0 0
    %823 = vmatmul.mubr.bf16.gmra.mxu0 %v654
    %v824 = vpop.f32.mrf.mxu0
    %v825 = vadd.f32 %v684, %v824
    %v826 = vpop.f32.mrf.mxu0
    %v827 = vpop.f32.mrf.mxu0
    %v828 = vadd.f32 %v684, %v827
    %v829 = vpop.f32.mrf.mxu0
    %830 = vmatprep.mubr.bf16.mxu0 0
    %831 = vmatmul.mubr.bf16.gmra.mxu0 %v655
    %v832 = vpop.f32.mrf.mxu0
    %v833 = vadd.f32 %v684, %v832
    %v834 = vpop.f32.mrf.mxu0
    %v835 = vpop.f32.mrf.mxu0
    %v836 = vadd.f32 %v684, %v835
    %v837 = vpop.f32.mrf.mxu0
    %838 = vmatprep.mubr.bf16.mxu0 0
    %839 = vmatmul.mubr.bf16.gmra.mxu0 %v656
    %v840 = vpop.f32.mrf.mxu0
    %v841 = vadd.f32 %v684, %v840
    %v842 = vpop.f32.mrf.mxu0
    %v843 = vpop.f32.mrf.mxu0
    %v844 = vadd.f32 %v684, %v843
    %v845 = vpop.f32.mrf.mxu0
    %846 = vmatprep.mubr.bf16.mxu0 0
    %847 = vmatmul.mubr.bf16.gmra.mxu0 %v657
    %v848 = vpop.f32.mrf.mxu0
    %v849 = vadd.f32 %v684, %v848
    %v850 = vpop.f32.mrf.mxu0
    %v851 = vpop.f32.mrf.mxu0
    %v852 = vadd.f32 %v684, %v851
    %v853 = vpop.f32.mrf.mxu0
    %854 = vmatprep.mubr.bf16.mxu0 0
    %855 = vmatmul.mubr.bf16.gmra.mxu0 %v658
    %v856 = vpop.f32.mrf.mxu0
    %v857 = vadd.f32 %v684, %v856
    %v858 = vpop.f32.mrf.mxu0
    %v859 = vpop.f32.mrf.mxu0
    %v860 = vadd.f32 %v684, %v859
    %v861 = vpop.f32.mrf.mxu0
    %862 = vmatprep.mubr.bf16.mxu0 0
    %863 = vmatmul.mubr.bf16.gmra.mxu0 %v659
    %v864 = vpop.f32.mrf.mxu0
    %v865 = vadd.f32 %v684, %v864
    %v866 = vpop.f32.mrf.mxu0
    %v867 = vpop.f32.mrf.mxu0
    %v868 = vadd.f32 %v684, %v867
    %v869 = vpop.f32.mrf.mxu0
    %870 = vmatprep.mubr.bf16.mxu0 0
    %871 = vmatmul.mubr.bf16.gmra.mxu0 %v660
    %v872 = vpop.f32.mrf.mxu0
    %v873 = vadd.f32 %v684, %v872
    %v874 = vpop.f32.mrf.mxu0
    %v875 = vpop.f32.mrf.mxu0
    %v876 = vadd.f32 %v684, %v875
    %v877 = vpop.f32.mrf.mxu0
    %878 = vmatprep.mubr.bf16.mxu0 0
    %879 = vmatmul.mubr.bf16.gmra.mxu0 %v661
    %v880 = vpop.f32.mrf.mxu0
    %v881 = vadd.f32 %v684, %v880
    %v882 = vpop.f32.mrf.mxu0
    %v883 = vpop.f32.mrf.mxu0
    %v884 = vadd.f32 %v684, %v883
    %v885 = vpop.f32.mrf.mxu0
    %886 = vmatprep.mubr.bf16.mxu0 0
    %887 = vmatmul.mubr.bf16.gmra.mxu0 %v662
    %v888 = vpop.f32.mrf.mxu0
    %v889 = vadd.f32 %v684, %v888
    %v890 = vpop.f32.mrf.mxu0
    %v891 = vpop.f32.mrf.mxu0
    %v892 = vadd.f32 %v684, %v891
    %v893 = vpop.f32.mrf.mxu0
    %894 = vdwg.mxu0
    %v895 = vtanh.pop %v769
    %v896 = vtanh.pop %v772
    %v897 = vtanh.pop %v777
    %v898 = vtanh.pop %v780
    %v899 = vtanh.pop %v785
    %v900 = vtanh.pop %v788
    %v901 = vtanh.pop %v793
    %v902 = vtanh.pop %v796
    %v903 = vtanh.pop %v801
    %v904 = vtanh.pop %v804
    %v905 = vtanh.pop %v809
    %v906 = vtanh.pop %v812
    %v907 = vtanh.pop %v817
    %v908 = vtanh.pop %v820
    %v909 = vtanh.pop %v825
    %v910 = vtanh.pop %v828
    %v911 = vtanh.pop %v833
    %v912 = vtanh.pop %v836
    %v913 = vtanh.pop %v841
    %v914 = vtanh.pop %v844
    %v915 = vtanh.pop %v849
    %v916 = vtanh.pop %v852
    %v917 = vtanh.pop %v857
    %v918 = vtanh.pop %v860
    %v919 = vtanh.pop %v865
    %v920 = vtanh.pop %v868
    %v921 = vtanh.pop %v873
    %v922 = vtanh.pop %v876
    %v923 = vtanh.pop %v881
    %v924 = vtanh.pop %v884
    %v925 = vtanh.pop %v889
    %v926 = vtanh.pop %v892
    %vm927 = vcmask 31744
    %928 = vst.msk [vmem:[%s7] sm:$0xff] %vm927, %v895
    %929 = vst.msk [vmem:[%s7 + $0x8] sm:$0xff] %vm927, %v896
    %930 = vst.msk [vmem:[%s7 + $0x10] sm:$0xff] %vm927, %v897
    %931 = vst.msk [vmem:[%s7 + $0x18] sm:$0xff] %vm927, %v898
    %932 = vst.msk [vmem:[%s7 + $0x20] sm:$0xff] %vm927, %v899
    %933 = vst.msk [vmem:[%s7 + $0x28] sm:$0xff] %vm927, %v900
    %934 = vst.msk [vmem:[%s7 + $0x30] sm:$0xff] %vm927, %v901
    %935 = vst.msk [vmem:[%s7 + $0x38] sm:$0xff] %vm927, %v902
    %936 = vst.msk [vmem:[%s7 + $0x40] sm:$0xff] %vm927, %v903
    %937 = vst.msk [vmem:[%s7 + $0x48] sm:$0xff] %vm927, %v904
    %938 = vst.msk [vmem:[%s7 + $0x50] sm:$0xff] %vm927, %v905
    %939 = vst.msk [vmem:[%s7 + $0x58] sm:$0xff] %vm927, %v906
    %940 = vst.msk [vmem:[%s7 + $0x60] sm:$0xff] %vm927, %v907
    %941 = vst.msk [vmem:[%s7 + $0x68] sm:$0xff] %vm927, %v908
    %942 = vst.msk [vmem:[%s7 + $0x70] sm:$0xff] %vm927, %v909
    %943 = vst.msk [vmem:[%s7 + $0x78] sm:$0xff] %vm927, %v910
    %944 = vst.msk [vmem:[%s7 + $0x80] sm:$0xff] %vm927, %v911
    %945 = vst.msk [vmem:[%s7 + $0x88] sm:$0xff] %vm927, %v912
    %946 = vst.msk [vmem:[%s7 + $0x90] sm:$0xff] %vm927, %v913
    %947 = vst.msk [vmem:[%s7 + $0x98] sm:$0xff] %vm927, %v914
    %948 = vst.msk [vmem:[%s7 + $0xa0] sm:$0xff] %vm927, %v915
    %949 = vst.msk [vmem:[%s7 + $0xa8] sm:$0xff] %vm927, %v916
    %950 = vst.msk [vmem:[%s7 + $0xb0] sm:$0xff] %vm927, %v917
    %951 = vst.msk [vmem:[%s7 + $0xb8] sm:$0xff] %vm927, %v918
    %952 = vst.msk [vmem:[%s7 + $0xc0] sm:$0xff] %vm927, %v919
    %953 = vst.msk [vmem:[%s7 + $0xc8] sm:$0xff] %vm927, %v920
    %954 = vst.msk [vmem:[%s7 + $0xd0] sm:$0xff] %vm927, %v921
    %955 = vst.msk [vmem:[%s7 + $0xd8] sm:$0xff] %vm927, %v922
    %956 = vst.msk [vmem:[%s7 + $0xe0] sm:$0xff] %vm927, %v923
    %957 = vst.msk [vmem:[%s7 + $0xe8] sm:$0xff] %vm927, %v924
    %958 = vst.msk [vmem:[%s7 + $0xf0] sm:$0xff] %vm927, %v925
    %959 = vst.msk [vmem:[%s7 + $0xf8] sm:$0xff] %vm927, %v926
    // Predicated region
    $region38: #{tpu_custom_call.1} parent=1 // pred_check
      _
    $region39: #{tpu_custom_call.1} parent=1 // pred_check_branch
      %961 = sbr.rel (0) target = $region41
    $region40: #{tpu_custom_call.1} parent=1 // pred_region
      _
    $region41: #{tpu_custom_call.1} parent=1 // pred_fallthru
      _
    // Predicated region
    $region42: #{tpu_custom_call.1} parent=1 // pred_check
      _
    $region43: #{tpu_custom_call.1} parent=1 // pred_check_branch
      %963 = sbr.rel (0) target = $region45
    $region44: #{tpu_custom_call.1} parent=1 // pred_region
      _
    $region45: #{tpu_custom_call.1} parent=1 // pred_fallthru
      _
    %964 = vsyncpa [#allocation3], 1
    %965 = vsyncpa [#allocation5], 1

</llo_original>
